<compile_context>
chip_gen: v7x
topology: tpu7x:2x2x1
jax: 0.10.0
libtpu: 0.0.40
codegen_flags: <defaults>
</compile_context>

<pallas_src>
import functools

import jax
import jax.numpy as jnp
from jax.experimental import pallas as pl
from jax.experimental.pallas import tpu as pltpu


# ------------------------------- kernels -------------------------------------

def _grn_cf_kernel(x_ref, gamma_ref, beta_ref, o_ref, nx_ref, *, eps, tc):
    """channel_first.  grid = (B, 2, T); x/o blocks (1, tc, S), gamma/beta
    blocks (tc, 1), nx_ref VMEM scratch (C, 1)."""
    p = pl.program_id(1)              # 0: reduce, 1: apply
    t = pl.program_id(2)              # channel tile
    nt = pl.num_programs(2)
    c0 = pl.multiple_of(t * tc, tc)   # aligned row offset into the scratch

    @pl.when(p == 0)
    def _reduce():
        xt = x_ref[0].astype(jnp.float32)                        # (tc, S)
        # Each channel tile sees its full spatial extent -> direct write,
        # no init and no accumulate needed.
        nx_ref[pl.ds(c0, tc), :] = jnp.sum(xt * xt, axis=-1, keepdims=True)

    @pl.when(jnp.logical_and(p == 0, t == nt - 1))
    def _finalize():
        gx = jnp.sqrt(nx_ref[...])                               # (C, 1) L2 norms
        nx_ref[...] = gx / (jnp.mean(gx) + eps)                  # nx

    @pl.when(p == 1)
    def _apply():
        xt = x_ref[0].astype(jnp.float32)                        # (tc, S)
        nx = nx_ref[pl.ds(c0, tc), :]                            # (tc, 1)
        y = gamma_ref[...] * (xt * nx) + beta_ref[...] + xt
        o_ref[0] = y.astype(o_ref.dtype)


def _grn_cl_kernel(x_ref, gamma_ref, beta_ref, o_ref, acc_ref, *, eps):
    """channel_last.  grid = (B, 2, T); x/o blocks (1, ts, C), gamma/beta
    blocks (1, C), acc_ref VMEM scratch (1, C)."""
    p = pl.program_id(1)
    t = pl.program_id(2)
    nt = pl.num_programs(2)

    @pl.when(jnp.logical_and(p == 0, t == 0))
    def _init():
        acc_ref[...] = jnp.zeros_like(acc_ref)

    @pl.when(p == 0)
    def _reduce():
        xt = x_ref[0].astype(jnp.float32)                        # (ts, C)
        acc_ref[...] += jnp.sum(xt * xt, axis=0, keepdims=True)  # (1, C)

    @pl.when(jnp.logical_and(p == 0, t == nt - 1))
    def _finalize():
        gx = jnp.sqrt(acc_ref[...])                              # (1, C)
        acc_ref[...] = gx / (jnp.mean(gx) + eps)                 # nx

    @pl.when(p == 1)
    def _apply():
        xt = x_ref[0].astype(jnp.float32)                        # (ts, C)
        y = gamma_ref[...] * (xt * acc_ref[...]) + beta_ref[...] + xt
        o_ref[0] = y.astype(o_ref.dtype)


# ------------------------------- helpers --------------------------------------

def _sublane_step(dtype):
    # Minimum legal second-minor block multiple per element width.
    return {4: 8, 2: 16, 1: 32}.get(jnp.dtype(dtype).itemsize, 8)


def _pick_tile(full, step, row_bytes, budget):
    """Largest divisor of `full` that is a multiple of `step` whose tile
    (tile * row_bytes) fits `budget`; returns `full` if everything fits or if
    no legal tiling exists (block then equals the full dim, always allowed)."""
    if full * row_bytes <= budget:
        return full
    legal = [d for d in range(step, full, step) if full % d == 0]
    if not legal:
        return full
    fitting = [d for d in legal if d * row_bytes <= budget]
    return max(fitting) if fitting else min(legal)


def _vmem_limit(block_bytes):
    # x + y blocks, double-buffered, plus params / scratch / margin.
    return int(min(48 << 20, max(16 << 20, 8 * block_bytes + (4 << 20))))


def _cost(B, C, S, itemsize, num_tiles):
    reads = 1 if num_tiles == 1 else 2               # x re-streamed iff tiled
    return pl.CostEstimate(
        flops=6 * B * C * S,
        transcendentals=B * C,
        bytes_accessed=(reads + 1) * B * C * S * itemsize + 2 * C * 4)


# ------------------------------- wrappers -------------------------------------

def _grn_channel_first(x, gamma, beta, eps, max_block_bytes):
    B, C, H, W = x.shape
    S = H * W
    itemsize = jnp.dtype(x.dtype).itemsize
    x3 = x.reshape(B, C, S)                         # spatial flattened on lanes
    gamma2 = gamma.astype(jnp.float32).reshape(C, 1)
    beta2 = beta.astype(jnp.float32).reshape(C, 1)

    tc = _pick_tile(C, _sublane_step(x.dtype), S * itemsize, max_block_bytes)
    num_tiles = C // tc
    block_bytes = tc * S * itemsize

    kernel = functools.partial(_grn_cf_kernel, eps=float(eps), tc=tc)
    y3 = pl.pallas_call(
        kernel,
        out_shape=jax.ShapeDtypeStruct((B, C, S), x.dtype),
        grid_spec=pltpu.PrefetchScalarGridSpec(
            num_scalar_prefetch=0,
            grid=(B, 2, num_tiles),
            in_specs=[
                pl.BlockSpec((1, tc, S), lambda b, p, t: (b, t, 0)),     # x
                pl.BlockSpec((tc, 1), lambda b, p, t: (t * p, 0)),       # gamma
                pl.BlockSpec((tc, 1), lambda b, p, t: (t * p, 0)),       # beta
            ],
            # Pinned to (b, 0, 0) during the reduce phase so nothing stale is
            # ever flushed to HBM before phase 1 writes it.
            out_specs=pl.BlockSpec((1, tc, S), lambda b, p, t: (b, t * p, 0)),
            scratch_shapes=[pltpu.VMEM((C, 1), jnp.float32)],
        ),
        compiler_params=pltpu.CompilerParams(
            dimension_semantics=("parallel", "arbitrary", "arbitrary"),
            vmem_limit_bytes=_vmem_limit(block_bytes),
        ),
        cost_estimate=_cost(B, C, S, itemsize, num_tiles),
    )(x3, gamma2, beta2)
    return y3.reshape(B, C, H, W)


def _grn_channel_last(x, gamma, beta, eps, max_block_bytes):
    B, H, W, C = x.shape
    S = H * W
    itemsize = jnp.dtype(x.dtype).itemsize
    x3 = x.reshape(B, S, C)                         # channels on lanes
    gamma2 = gamma.astype(jnp.float32).reshape(1, C)
    beta2 = beta.astype(jnp.float32).reshape(1, C)

    ts = _pick_tile(S, _sublane_step(x.dtype), C * itemsize, max_block_bytes)
    num_tiles = S // ts
    block_bytes = ts * C * itemsize

    kernel = functools.partial(_grn_cl_kernel, eps=float(eps))
    y3 = pl.pallas_call(
        kernel,
        out_shape=jax.ShapeDtypeStruct((B, S, C), x.dtype),
        grid_spec=pltpu.PrefetchScalarGridSpec(
            num_scalar_prefetch=0,
            grid=(B, 2, num_tiles),
            in_specs=[
                pl.BlockSpec((1, ts, C), lambda b, p, t: (b, t, 0)),     # x
                pl.BlockSpec((1, C), lambda b, p, t: (0, 0)),            # gamma
                pl.BlockSpec((1, C), lambda b, p, t: (0, 0)),            # beta
            ],
            out_specs=pl.BlockSpec((1, ts, C), lambda b, p, t: (b, t * p, 0)),
            scratch_shapes=[pltpu.VMEM((1, C), jnp.float32)],
        ),
        compiler_params=pltpu.CompilerParams(
            dimension_semantics=("parallel", "arbitrary", "arbitrary"),
            vmem_limit_bytes=_vmem_limit(block_bytes),
        ),
        cost_estimate=_cost(B, C, S, itemsize, num_tiles),
    )(x3, gamma2, beta2)
    return y3.reshape(B, H, W, C)


def grn_forward(x, gamma, beta, eps=1e-6, data_format="channel_first",
                max_block_bytes=4 << 20):
    """GRN forward.  x: (B,C,H,W) if channel_first, (B,H,W,C) if channel_last."""
    if data_format == "channel_last":
        return _grn_channel_last(x, gamma, beta, eps, max_block_bytes)
    return _grn_channel_first(x, gamma, beta, eps, max_block_bytes)


# ------------------------------- reference ------------------------------------

def grn_reference(x, gamma, beta, eps=1e-6, data_format="channel_first"):
    x = x.astype(jnp.float32)
    if data_format == "channel_last":
        gx = jnp.sqrt(jnp.sum(x * x, axis=(1, 2), keepdims=True))
        nx = gx / (jnp.mean(gx, axis=-1, keepdims=True) + eps)
        return gamma * (x * nx) + beta + x
    gx = jnp.sqrt(jnp.sum(x * x, axis=(2, 3), keepdims=True))
    nx = gx / (jnp.mean(gx, axis=1, keepdims=True) + eps)
    g = gamma.reshape(1, -1, 1, 1)
    b = beta.reshape(1, -1, 1, 1)
    return g * (x * nx) + b + x


# --------------------------------- main ---------------------------------------

if __name__ == "__main__":
    B, C, H, W = 2, 32, 16, 16

    key = jax.random.PRNGKey(0)
    k0, k1, k2 = jax.random.split(key, 3)
    x = jax.random.normal(k0, (B, C, H, W), jnp.float32)
    # gamma/beta are zero-initialised in the module (output == x); use small
    # random values so the check is non-trivial.  Shapes match nn.Parameter.
    gamma = jax.random.normal(k1, (C,), jnp.float32) * 0.1
    beta = jax.random.normal(k2, (C,), jnp.float32) * 0.1

    y_ref = grn_reference(x, gamma, beta)

    # 1) channel_first (module default), single-pass fast path (T == 1).
    y = jax.block_until_ready(grn_forward(x, gamma, beta))
    assert jnp.allclose(y, y_ref, atol=1e-4, rtol=1e-4), "channel_first mismatch"

    # 2) channel_first, forced channel-tiled two-phase path (T > 1).
    y_t = jax.block_until_ready(
        grn_forward(x, gamma, beta, max_block_bytes=8 * H * W * 4))
    assert jnp.allclose(y_t, y_ref, atol=1e-4, rtol=1e-4), "tiled cf mismatch"

    # 3) channel_last, native layout (no wrapper transposes), T == 1.
    x_cl = jnp.transpose(x, (0, 2, 3, 1))
    y_cl_ref = grn_reference(x_cl, gamma, beta, data_format="channel_last")
    y_cl = jax.block_until_ready(
        grn_forward(x_cl, gamma, beta, data_format="channel_last"))
    assert jnp.allclose(y_cl, y_cl_ref, atol=1e-4, rtol=1e-4), "channel_last mismatch"

    # 4) channel_last, forced spatial-tiled path (T > 1).
    y_cl_t = jax.block_until_ready(
        grn_forward(x_cl, gamma, beta, data_format="channel_last",
                    max_block_bytes=64 * C * 4))
    assert jnp.allclose(y_cl_t, y_cl_ref, atol=1e-4, rtol=1e-4), "tiled cl mismatch"

    # 5) bf16 input (native-dtype DMA, f32 math in-registers, bf16 output).
    xb = x.astype(jnp.bfloat16)
    y_bf = jax.block_until_ready(grn_forward(xb, gamma, beta))
    y_bf_ref = grn_reference(xb.astype(jnp.float32), gamma, beta)
    assert jnp.allclose(y_bf.astype(jnp.float32), y_bf_ref, atol=3e-2, rtol=3e-2), \
        "bf16 mismatch"

    print("KERNEL_OK")
</pallas_src>

<mosaic_0001>
module attributes {stable_mosaic.version = 11 : i64} {
  func.func @_grn_cf_kernel(%arg0: i32, %arg1: i32, %arg2: i32, %arg3: memref<1x32x256xf32, #tpu.memory_space<vmem>>, %arg4: memref<32x1xf32, #tpu.memory_space<vmem>>, %arg5: memref<32x1xf32, #tpu.memory_space<vmem>>, %arg6: memref<1x32x256xf32, #tpu.memory_space<vmem>>, %arg7: memref<32x1xf32, #tpu.memory_space<vmem>>) attributes {dimension_semantics = [#tpu.dimension_semantics<parallel>, #tpu.dimension_semantics<arbitrary>, #tpu.dimension_semantics<arbitrary>], iteration_bounds = array<i64: 2, 2, 1>, scalar_prefetch = 0 : i64, scratch_operands = 1 : i64, tpu.core_type = #tpu.core_type<tc>, window_params = [{transform_indices = @transform_0, window_bounds = array<i64: 1, 32, 256>}, {transform_indices = @transform_1, window_bounds = array<i64: 32, 1>}, {transform_indices = @transform_2, window_bounds = array<i64: 32, 1>}, {transform_indices = @transform_3, window_bounds = array<i64: 1, 32, 256>}]} {
    %c32_i32 = arith.constant 32 : i32
    %0 = arith.muli %arg2, %c32_i32 : i32
    %1 = tpu.assume_multiple %0, 32 : i32
    %c0_i32 = arith.constant 0 : i32
    %2 = arith.cmpi eq, %arg1, %c0_i32 : i32
    %3 = arith.extui %2 : i1 to i32
    %c0_i32_0 = arith.constant 0 : i32
    %4 = arith.cmpi ne, %3, %c0_i32_0 : i32
    scf.if %4 {
      %c0 = arith.constant 0 : index
      %c0_5 = arith.constant 0 : index
      %c0_6 = arith.constant 0 : index
      %13 = vector.load %arg3[%c0, %c0_5, %c0_6] : memref<1x32x256xf32, #tpu.memory_space<vmem>>, vector<1x32x256xf32>
      %14 = vector.shape_cast %13 : vector<1x32x256xf32> to vector<32x256xf32>
      %15 = arith.mulf %14, %14 : vector<32x256xf32>
      %cst = arith.constant dense<0.000000e+00> : vector<32xf32>
      %16 = vector.multi_reduction <add>, %15, %cst [1] : vector<32x256xf32> to vector<32xf32>
      %17 = vector.shape_cast %16 : vector<32xf32> to vector<32x1xf32>
      %18 = arith.index_cast %1 : i32 to index
      %c0_7 = arith.constant 0 : index
      %19 = vector.load %arg7[%18, %c0_7] : memref<32x1xf32, #tpu.memory_space<vmem>>, vector<32x1xf32>
      tpu.vector_store %arg7[%18, %c0_7], %17 {strides = array<i32>} : memref<32x1xf32, #tpu.memory_space<vmem>>, vector<32x1xf32>,
    } else {
    }
    %c0_i32_1 = arith.constant 0 : i32
    %5 = arith.cmpi eq, %arg1, %c0_i32_1 : i32
    %c0_i32_2 = arith.constant 0 : i32
    %6 = arith.cmpi eq, %arg2, %c0_i32_2 : i32
    %7 = arith.andi %5, %6 : i1
    %8 = arith.extui %7 : i1 to i32
    %c0_i32_3 = arith.constant 0 : i32
    %9 = arith.cmpi ne, %8, %c0_i32_3 : i32
    scf.if %9 {
      %c0 = arith.constant 0 : index
      %c0_5 = arith.constant 0 : index
      %13 = vector.load %arg7[%c0, %c0_5] : memref<32x1xf32, #tpu.memory_space<vmem>>, vector<32x1xf32>
      %14 = math.sqrt %13 : vector<32x1xf32>
      %15 = vector.shape_cast %14 : vector<32x1xf32> to vector<1x32x1xf32>
      %cst = arith.constant dense<0.000000e+00> : vector<1xf32>
      %16 = vector.multi_reduction <add>, %15, %cst [1, 2] : vector<1x32x1xf32> to vector<1xf32>
      %17 = vector.shape_cast %16 : vector<1xf32> to vector<1x1x1xf32>
      %18 = vector.extract %17[0, 0, 0] : f32 from vector<1x1x1xf32>
      %cst_6 = arith.constant 3.200000e+01 : f32
      %19 = arith.divf %18, %cst_6 : f32
      %cst_7 = arith.constant 9.99999997E-7 : f32
      %20 = arith.addf %19, %cst_7 : f32
      %21 = vector.broadcast %20 : f32 to vector<32x1xf32>
      %22 = arith.divf %14, %21 : vector<32x1xf32>
      %c0_8 = arith.constant 0 : index
      %c0_9 = arith.constant 0 : index
      %23 = vector.load %arg7[%c0_8, %c0_9] : memref<32x1xf32, #tpu.memory_space<vmem>>, vector<32x1xf32>
      tpu.vector_store %arg7[%c0_8, %c0_9], %22 {strides = array<i32>} : memref<32x1xf32, #tpu.memory_space<vmem>>, vector<32x1xf32>,
    } else {
    }
    %c1_i32 = arith.constant 1 : i32
    %10 = arith.cmpi eq, %arg1, %c1_i32 : i32
    %11 = arith.extui %10 : i1 to i32
    %c0_i32_4 = arith.constant 0 : i32
    %12 = arith.cmpi ne, %11, %c0_i32_4 : i32
    scf.if %12 {
      %c0 = arith.constant 0 : index
      %c0_5 = arith.constant 0 : index
      %c0_6 = arith.constant 0 : index
      %13 = vector.load %arg3[%c0, %c0_5, %c0_6] : memref<1x32x256xf32, #tpu.memory_space<vmem>>, vector<1x32x256xf32>
      %14 = vector.shape_cast %13 : vector<1x32x256xf32> to vector<32x256xf32>
      %15 = arith.index_cast %1 : i32 to index
      %c0_7 = arith.constant 0 : index
      %16 = vector.load %arg7[%15, %c0_7] : memref<32x1xf32, #tpu.memory_space<vmem>>, vector<32x1xf32>
      %c0_8 = arith.constant 0 : index
      %c0_9 = arith.constant 0 : index
      %17 = vector.load %arg4[%c0_8, %c0_9] : memref<32x1xf32, #tpu.memory_space<vmem>>, vector<32x1xf32>
      %18 = vector.broadcast %16 : vector<32x1xf32> to vector<32x256xf32>
      %19 = arith.mulf %14, %18 : vector<32x256xf32>
      %20 = vector.broadcast %17 : vector<32x1xf32> to vector<32x256xf32>
      %21 = arith.mulf %20, %19 : vector<32x256xf32>
      %c0_10 = arith.constant 0 : index
      %c0_11 = arith.constant 0 : index
      %22 = vector.load %arg5[%c0_10, %c0_11] : memref<32x1xf32, #tpu.memory_space<vmem>>, vector<32x1xf32>
      %23 = vector.broadcast %22 : vector<32x1xf32> to vector<32x256xf32>
      %24 = arith.addf %21, %23 : vector<32x256xf32>
      %25 = arith.addf %24, %14 : vector<32x256xf32>
      %c0_12 = arith.constant 0 : index
      %c0_13 = arith.constant 0 : index
      %c0_14 = arith.constant 0 : index
      %26 = vector.load %arg6[%c0_12, %c0_13, %c0_14] : memref<1x32x256xf32, #tpu.memory_space<vmem>>, vector<1x32x256xf32>
      %27 = vector.shape_cast %26 : vector<1x32x256xf32> to vector<32x256xf32>
      %28 = vector.shape_cast %25 : vector<32x256xf32> to vector<1x32x256xf32>
      tpu.vector_store %arg6[%c0_12, %c0_13, %c0_14], %28 {strides = array<i32>} : memref<1x32x256xf32, #tpu.memory_space<vmem>>, vector<1x32x256xf32>,
    } else {
    }
    return
  }
  func.func @transform_0(%arg0: i32, %arg1: i32, %arg2: i32) -> (i32, i32, i32) {
    %c0_i32 = arith.constant 0 : i32
    %c0_i32_0 = arith.constant 0 : i32
    return %arg0, %arg2, %c0_i32 : i32, i32, i32
  }
  func.func @transform_1(%arg0: i32, %arg1: i32, %arg2: i32) -> (i32, i32) {
    %0 = arith.muli %arg2, %arg1 : i32
    %c0_i32 = arith.constant 0 : i32
    %c0_i32_0 = arith.constant 0 : i32
    return %0, %c0_i32 : i32, i32
  }
  func.func @transform_2(%arg0: i32, %arg1: i32, %arg2: i32) -> (i32, i32) {
    %0 = arith.muli %arg2, %arg1 : i32
    %c0_i32 = arith.constant 0 : i32
    %c0_i32_0 = arith.constant 0 : i32
    return %0, %c0_i32 : i32, i32
  }
  func.func @transform_3(%arg0: i32, %arg1: i32, %arg2: i32) -> (i32, i32, i32) {
    %0 = arith.muli %arg2, %arg1 : i32
    %c0_i32 = arith.constant 0 : i32
    %c0_i32_0 = arith.constant 0 : i32
    return %arg0, %0, %c0_i32 : i32, i32, i32
  }
}

</mosaic_0001>

<llo_original>
// kernel: tpu_custom_call.1
$region0: #{tpu_custom_call.1}
  #allocation0 [shape = 'u32[]', space=smem, size = 0x4, offset = 0x4, fixed_abs, tag = 'smem constant byte address 0x4 - core index']
  #allocation1 [shape = 'u32[144,128]{1,0:T(1,128)}', space=vmem, size = 0x12000, scoped, tag = 'internal scratch']
  #allocation2 [shape = 'f32[32,1]{1,0:T(8,128)}', space=vmem, size = 0x4000, scoped, tag = 'scratch operand']
  %s0 = inlined_call_operand.hbm [shape: f32[2,32,256], index: 0, kind: input, shape index: {}]
  %s1 = inlined_call_operand.vmem [shape: f32[32,1], index: 1, kind: input, shape index: {}]
  %s2 = inlined_call_operand.vmem [shape: f32[32,1], index: 2, kind: input, shape index: {}]
  %s3 = inlined_call_operand.hbm [shape: f32[2,32,256], index: 3, kind: output, shape index: {}]
  %s4 = sld [smem:[#allocation0]]
  $region61: #{tpu_custom_call.1} parent=0
    _
  %s6 = ssub.s32 1, %s4
  %s7 = scalar_select 0, %s6, %s4
  $region1: #{tpu_custom_call.1} parent=0
    #allocation3 [shape = 'u8[65536]{0}', space=vmem, size = 0x10000, scoped, tag = 'input window, operand 0']
    #allocation4 [shape = 's32[2]{0}', space=sflag, size = 0x8, scoped, tag = 'scoped memory for tpu_custom_call.1']
    #allocation5 [shape = 's32[2]{0}', space=sflag, size = 0x8, scoped, tag = 'scoped memory for tpu_custom_call.1']
    #allocation6 [shape = 'u8[65536]{0}', space=vmem, size = 0x10000, scoped, tag = 'output window, operand 0']
    %8 = vsyncpa [#allocation4], 0
    %s9 = scalar_lea.sflag [#allocation4], 1
    %10 = vsyncpa %s9, 0
    %11 = vsyncpa [#allocation5], 0
    %s12 = scalar_lea.sflag [#allocation5], 1
    %13 = vsyncpa %s12, 0
    loop: start=0, step=1, limit=6
    $region2: #{tpu_custom_call.1} parent=1 // loop_pre_header
      _
    $region3: #{tpu_custom_call.1} parent=1 // loop_header
      %s15 = sphi 0, %s19
      %p16 = scmp.ge.s32.totalorder %s15, 6
      %s22 = sphi 0, %s41
      %s23 = sphi 0, %s37
      %s24 = sphi 0, %s33
      %s25 = sphi 0, %s22
      %s26 = sphi 0, %s23
      %s27 = sphi 0, %s24
      %s28 = sphi 0, %s25
      %s29 = sphi 0, %s26
      %s30 = sphi 0, %s27
      %s46 = sphi 0, %s48
      %s49 = sphi 0, %s46
      %s50 = sphi 0, %s49
      %s66 = sphi 0, %s50
      %s74 = sphi 0, %s76
      %s77 = sphi 0, %s74
      %s78 = sphi 0, %s77
      %s94 = sphi 0, %s78
      %s102 = sphi 0, %s104
      %s105 = sphi 0, %s102
      %s106 = sphi 0, %s105
      %s122 = sphi 0, %s106
      %s132 = sphi 0, %s134
      %s135 = sphi 0, %s132
      %s136 = sphi 0, %s135
      %s152 = sphi 0, %s136
    $region4: #{tpu_custom_call.1} parent=1 // loop_header_branch
      %18 = sbr.rel (%p16) target = $region8
    $region5: #{tpu_custom_call.1} parent=1 // loop_body
      %s20 = ssub.s32 %s15, 1
      %s21 = ssub.s32 %s15, 2
      %s31 = sadd.s32 1, %s24
      %p32 = scmp.ge.s32.totalorder %s31, 1
      %s33 = scalar_select %p32, 0, %s31
      %s34 = sadd.s32 1, %s23
      %s35 = scalar_select %p32, %s34, %s23
      %p36 = scmp.ge.s32.totalorder %s35, 2
      %s37 = scalar_select %p36, 0, %s35
      %s38 = sadd.s32 1, %s22
      %s39 = scalar_select %p36, %s38, %s22
      %p40 = scmp.ge.s32.totalorder %s39, 2
      %s41 = scalar_select %p40, 0, %s39
      %s42 = ssub.s32 %s22, %s41
      %s43 = ssub.s32 %s24, %s33
      %s44 = sor.u32 %s42, %s43
      %p45 = scmp.eq.s32.totalorder %s44, 0
      %s47 = sadd.s32 %s46, 1
      %s48 = scalar_select %p45, %s46, %s47
      %p51 = pneg %p45
      %p52 = scmp.eq.s32.totalorder %s15, 3
      %p53 = por %p51, %p52
      %p54 = scmp.ne.s32.totalorder %s46, %s49
      %p55 = scmp.eq.s32.totalorder %s15, 0
      %p56 = por %p54, %p55
      %p57 = scmp.ne.s32.totalorder %s46, %s49
      %p58 = scmp.eq.s32.totalorder %s20, 3
      %p59 = por %p57, %p58
      %p60 = scmp.ne.s32.totalorder %s49, %s50
      %p61 = scmp.eq.s32.totalorder %s20, 0
      %p62 = por %p60, %p61
      %p63 = scmp.ne.s32.totalorder %s49, %s50
      %p64 = scmp.eq.s32.totalorder %s21, 3
      %p65 = por %p63, %p64
      %p67 = scmp.ne.s32.totalorder %s50, %s66
      %p68 = scmp.eq.s32.totalorder %s21, 0
      %p69 = por %p67, %p68
      %s70 = smul.u32 %s24, %s23
      %s71 = smul.u32 %s33, %s37
      %s72 = ssub.s32 %s70, %s71
      %p73 = scmp.eq.s32.totalorder %s72, 0
      %s75 = sadd.s32 %s74, 1
      %s76 = scalar_select %p73, %s74, %s75
      %p79 = pneg %p73
      %p80 = scmp.eq.s32.totalorder %s15, 3
      %p81 = por %p79, %p80
      %p82 = scmp.ne.s32.totalorder %s74, %s77
      %p83 = scmp.eq.s32.totalorder %s15, 0
      %p84 = por %p82, %p83
      %p85 = scmp.ne.s32.totalorder %s74, %s77
      %p86 = scmp.eq.s32.totalorder %s20, 3
      %p87 = por %p85, %p86
      %p88 = scmp.ne.s32.totalorder %s77, %s78
      %p89 = scmp.eq.s32.totalorder %s20, 0
      %p90 = por %p88, %p89
      %p91 = scmp.ne.s32.totalorder %s77, %s78
      %p92 = scmp.eq.s32.totalorder %s21, 3
      %p93 = por %p91, %p92
      %p95 = scmp.ne.s32.totalorder %s78, %s94
      %p96 = scmp.eq.s32.totalorder %s21, 0
      %p97 = por %p95, %p96
      %s98 = smul.u32 %s24, %s23
      %s99 = smul.u32 %s33, %s37
      %s100 = ssub.s32 %s98, %s99
      %p101 = scmp.eq.s32.totalorder %s100, 0
      %s103 = sadd.s32 %s102, 1
      %s104 = scalar_select %p101, %s102, %s103
      %p107 = pneg %p101
      %p108 = scmp.eq.s32.totalorder %s15, 3
      %p109 = por %p107, %p108
      %p110 = scmp.ne.s32.totalorder %s102, %s105
      %p111 = scmp.eq.s32.totalorder %s15, 0
      %p112 = por %p110, %p111
      %p113 = scmp.ne.s32.totalorder %s102, %s105
      %p114 = scmp.eq.s32.totalorder %s20, 3
      %p115 = por %p113, %p114
      %p116 = scmp.ne.s32.totalorder %s105, %s106
      %p117 = scmp.eq.s32.totalorder %s20, 0
      %p118 = por %p116, %p117
      %p119 = scmp.ne.s32.totalorder %s105, %s106
      %p120 = scmp.eq.s32.totalorder %s21, 3
      %p121 = por %p119, %p120
      %p123 = scmp.ne.s32.totalorder %s106, %s122
      %p124 = scmp.eq.s32.totalorder %s21, 0
      %p125 = por %p123, %p124
      %s126 = smul.u32 %s24, %s23
      %s127 = smul.u32 %s33, %s37
      %s128 = ssub.s32 %s22, %s41
      %s129 = ssub.s32 %s126, %s127
      %s130 = sor.u32 %s128, %s129
      %p131 = scmp.eq.s32.totalorder %s130, 0
      %s133 = sadd.s32 %s132, 1
      %s134 = scalar_select %p131, %s132, %s133
      %p137 = pneg %p131
      %p138 = scmp.eq.s32.totalorder %s15, 3
      %p139 = por %p137, %p138
      %p140 = scmp.ne.s32.totalorder %s132, %s135
      %p141 = scmp.eq.s32.totalorder %s15, 0
      %p142 = por %p140, %p141
      %p143 = scmp.ne.s32.totalorder %s132, %s135
      %p144 = scmp.eq.s32.totalorder %s20, 3
      %p145 = por %p143, %p144
      %p146 = scmp.ne.s32.totalorder %s135, %s136
      %p147 = scmp.eq.s32.totalorder %s20, 0
      %p148 = por %p146, %p147
      %p149 = scmp.ne.s32.totalorder %s135, %s136
      %p150 = scmp.eq.s32.totalorder %s21, 3
      %p151 = por %p149, %p150
      %p153 = scmp.ne.s32.totalorder %s136, %s152
      %p154 = scmp.eq.s32.totalorder %s21, 0
      %p155 = por %p153, %p154
      %p156 = scmp.le.s32.totalorder 1, %s15
      %p157 = scmp.lt.s32.totalorder %s15, 5
      %p158 = pnand %p156, %p157
      %p159 = pneg %p158
      // Predicated region
      $region9: #{tpu_custom_call.1} parent=5 // pred_check
        _
      $region10: #{tpu_custom_call.1} parent=5 // pred_check_branch
        %161 = sbr.rel (%p158) target = $region12
      $region11: #{tpu_custom_call.1} parent=5 // pred_region
        %s162 = ssub.s32 %s15, 1
      $region12: #{tpu_custom_call.1} parent=5 // pred_fallthru
        _
      %p163 = scmp.lt.s32.totalorder %s15, 4
      // Predicated region
      $region13: #{tpu_custom_call.1} parent=5 // pred_check
        %p164 = pneg %p163
      $region14: #{tpu_custom_call.1} parent=5 // pred_check_branch
        %166 = sbr.rel (%p164) target = $region16
      $region15: #{tpu_custom_call.1} parent=5 // pred_region
        // Predicated region
        $region17: #{tpu_custom_call.1} parent=15 // pred_check
          %p167 = pneg %p56
        $region18: #{tpu_custom_call.1} parent=15 // pred_check_branch
          %169 = sbr.rel (%p167) target = $region20
        $region19: #{tpu_custom_call.1} parent=15 // pred_region
          %s170 = sand.u32 %s46, 1
          %s171 = scalar_lea.sflag [#allocation4], %s170
          %s172 = sand.u32 %s46, 1
          %s173 = smul.addr %s172, 64
          %s174 = scalar_lea.vmem [#allocation3], %s173
          %s175 = smul.u32 4, %s24
          %s177 = ssub.s32 1024, 1024
          %178 = vsyncadd %s171, %s177
          %s179 = smul.addr %s175, 2
          %s180 = smul.addr %s22, 8
          %s181 = sadd.s32 %s179, %s180
          %s182 = smul.addr %s181, 128
          %s183 = scalar_lea.hbm %s0, %s182
          %s184 = sshll.u32 %s174, 4
          %s185 = int_to_ptr.vmem [resolvable:$true] %s184
          %190 = dma.hbm_to_vmem [thread:$0]  %s183, 1024, %s185, %s171, 256, 256, 16
        $region20: #{tpu_custom_call.1} parent=15 // pred_fallthru
          _
        // Predicated region
        $region21: #{tpu_custom_call.1} parent=15 // pred_check
          %p191 = pneg %p84
        $region22: #{tpu_custom_call.1} parent=15 // pred_check_branch
          %193 = sbr.rel (%p191) target = $region24
        $region23: #{tpu_custom_call.1} parent=15 // pred_region
          %s194 = smul.u32 %s24, %s23
          %s195 = smul.u32 4, %s194
          %p196 = scmp.lt.s32.totalorder %s195, 3
          %s197 = scalar_select %p196, %s195, 3
          %s198 = smul.addr %s197, 8
          %s199 = scalar_lea.vmem %s1, %s198
          %s200 = smul.u32 %s24, %s23
          %s201 = smul.u32 4, %s200
        $region24: #{tpu_custom_call.1} parent=15 // pred_fallthru
          _
        // Predicated region
        $region25: #{tpu_custom_call.1} parent=15 // pred_check
          %p202 = pneg %p112
        $region26: #{tpu_custom_call.1} parent=15 // pred_check_branch
          %204 = sbr.rel (%p202) target = $region28
        $region27: #{tpu_custom_call.1} parent=15 // pred_region
          %s205 = smul.u32 %s24, %s23
          %s206 = smul.u32 4, %s205
          %p207 = scmp.lt.s32.totalorder %s206, 3
          %s208 = scalar_select %p207, %s206, 3
          %s209 = smul.addr %s208, 8
          %s210 = scalar_lea.vmem %s2, %s209
          %s211 = smul.u32 %s24, %s23
          %s212 = smul.u32 4, %s211
        $region28: #{tpu_custom_call.1} parent=15 // pred_fallthru
          _
      $region16: #{tpu_custom_call.1} parent=5 // pred_fallthru
        _
      %p213 = scmp.le.s32.totalorder 1, %s15
      %p214 = scmp.lt.s32.totalorder %s15, 5
      %p215 = pnand %p213, %p214
      %p216 = pneg %p215
      // Predicated region
      $region29: #{tpu_custom_call.1} parent=5 // pred_check
        _
      $region30: #{tpu_custom_call.1} parent=5 // pred_check_branch
        %218 = sbr.rel (%p215) target = $region32
      $region31: #{tpu_custom_call.1} parent=5 // pred_region
        %s219 = ssub.s32 %s15, 1
        %s220 = sand.u32 %s49, 1
        %s221 = scalar_lea.sflag [#allocation4], %s220
        %s222 = sand.u32 %s49, 1
        %s223 = smul.addr %s222, 64
        %s224 = scalar_lea.vmem [#allocation3], %s223
        // Predicated region
        $region33: #{tpu_custom_call.1} parent=31 // pred_check
          %p225 = pneg %p62
        $region34: #{tpu_custom_call.1} parent=31 // pred_check_branch
          %227 = sbr.rel (%p225) target = $region36
        $region35: #{tpu_custom_call.1} parent=31 // pred_region
          %228 = dma.done %s221, 1024
        $region36: #{tpu_custom_call.1} parent=31 // pred_fallthru
          _
        %s229 = sand.u32 %s49, 1
        %s230 = scalar_lea.sflag [#allocation4], %s229
        %s231 = sand.u32 %s49, 1
        %s232 = smul.addr %s231, 64
        %s233 = scalar_lea.vmem [#allocation3], %s232
        %p234 = pneg %p62
        %p235 = pneg %p59
        %s236 = smul.u32 %s27, %s26
        %s237 = smul.u32 4, %s236
        %p238 = scmp.lt.s32.totalorder %s237, 3
        %s239 = scalar_select %p238, %s237, 3
        %s240 = smul.addr %s239, 8
        %s241 = scalar_lea.vmem %s1, %s240
        %p242 = pneg %p90
        %p243 = pneg %p87
        %s244 = smul.u32 %s27, %s26
        %s245 = smul.u32 4, %s244
        %p246 = scmp.lt.s32.totalorder %s245, 3
        %s247 = scalar_select %p246, %s245, 3
        %s248 = smul.addr %s247, 8
        %s249 = scalar_lea.vmem %s2, %s248
        %p250 = pneg %p118
        %p251 = pneg %p115
        %p252 = pneg %p148
        %p253 = pneg %p145
        %s254 = sand.u32 %s135, 1
        %s255 = scalar_lea.sflag [#allocation5], %s254
        %s256 = sand.u32 %s135, 1
        %s257 = smul.addr %s256, 64
        %s258 = scalar_lea.vmem [#allocation6], %s257
        %s259 = smul.u32 4, %s27
        %s260 = smul.u32 %s27, %s26
        %s261 = smul.u32 4, %s260
        %p262 = scmp.lt.s32.totalorder %s261, 3
        %s263 = scalar_select %p262, %s261, 3
        %s264 = smul.addr %s263, 8
        %s265 = scalar_lea.vmem %s1, %s264
        %s266 = smul.u32 %s27, %s26
        %s267 = smul.u32 4, %s266
        %s268 = smul.u32 %s27, %s26
        %s269 = smul.u32 4, %s268
        %p270 = scmp.lt.s32.totalorder %s269, 3
        %s271 = scalar_select %p270, %s269, 3
        %s272 = smul.addr %s271, 8
        %s273 = scalar_lea.vmem %s2, %s272
        %s274 = smul.u32 %s27, %s26
        %s275 = smul.u32 4, %s274
        %s276 = smul.u32 %s27, %s26
        %s277 = smul.u32 4, %s276
        %s278 = smul.u32 %s27, 32
        %p279 = scmp.eq.s32.totalorder %s26, 0
        // Predicated region
        $region37: #{tpu_custom_call.1} parent=31 // pred_check
          %p280 = pneg %p279
        $region38: #{tpu_custom_call.1} parent=31 // pred_check_branch
          %282 = sbr.rel (%p280) target = $region40
        $region39: #{tpu_custom_call.1} parent=31 // pred_region
          %v283 = vld [vmem:[%s224] sm:$0xff]
          %v284 = vld [vmem:[%s224 + $0x8] sm:$0xff]
          %v285 = vld [vmem:[%s224 + $0x10] sm:$0xff]
          %v286 = vld [vmem:[%s224 + $0x18] sm:$0xff]
          %v287 = vld [vmem:[%s224 + $0x20] sm:$0xff]
          %v288 = vld [vmem:[%s224 + $0x28] sm:$0xff]
          %v289 = vld [vmem:[%s224 + $0x30] sm:$0xff]
          %v290 = vld [vmem:[%s224 + $0x38] sm:$0xff]
          %v291 = vmul.f32 %v283, %v283
          %v292 = vmul.f32 %v284, %v284
          %v293 = vmul.f32 %v285, %v285
          %v294 = vmul.f32 %v286, %v286
          %v295 = vmul.f32 %v287, %v287
          %v296 = vmul.f32 %v288, %v288
          %v297 = vmul.f32 %v289, %v289
          %v298 = vmul.f32 %v290, %v290
          %v299 = vadd.f32 %v291, %v292
          %300 = vadd.xlane.f32.xlu0 %v299
          %v301 = vpop.xlane.xlu0 %300
          %v302 = vadd.f32 %v293, %v294
          %303 = vadd.xlane.f32.xlu0 %v302
          %v304 = vpop.xlane.xlu0 %303
          %v305 = vadd.f32 %v295, %v296
          %306 = vadd.xlane.f32.xlu0 %v305
          %v307 = vpop.xlane.xlu0 %306
          %v308 = vadd.f32 %v297, %v298
          %309 = vadd.xlane.f32.xlu0 %v308
          %v310 = vpop.xlane.xlu0 %309
          %s311 = scalar_lea.vmem [#allocation2], %s278
          %vm312 = vcmask 7168
          %313 = vst.msk [vmem:[%s311] sm:$0xff] %vm312, %v301
          %314 = vst.msk [vmem:[%s311 + $0x8] sm:$0xff] %vm312, %v304
          %315 = vst.msk [vmem:[%s311 + $0x10] sm:$0xff] %vm312, %v307
          %316 = vst.msk [vmem:[%s311 + $0x18] sm:$0xff] %vm312, %v310
        $region40: #{tpu_custom_call.1} parent=31 // pred_fallthru
          _
        %p317 = scmp.eq.s32.totalorder %s27, 0
        %p318 = pnand %p279, %p317
        %p319 = pneg %p318
        // Predicated region
        $region41: #{tpu_custom_call.1} parent=31 // pred_check
          _
        $region42: #{tpu_custom_call.1} parent=31 // pred_check_branch
          %321 = sbr.rel (%p318) target = $region44
        $region43: #{tpu_custom_call.1} parent=31 // pred_region
          %v322 = vld [vmem:[#allocation2] sm:$0xff]
          %v323 = vld [vmem:[#allocation2 + $0x8] sm:$0xff]
          %v324 = vld [vmem:[#allocation2 + $0x10] sm:$0xff]
          %v325 = vld [vmem:[#allocation2 + $0x18] sm:$0xff]
          %v326 = vrsqrt.pop %v322
          %v327 = vmul.f32 %v322, %v326
          %vm328 = vcmp.eq.f32.partialorder %v322, inf
          %v329 = vsel %vm328, %v322, %v327
          %vm330 = vcmp.eq.f32.partialorder %v322, 0.0
          %v331 = vand.u32 %v322, 2147483648
          %v332 = vsel %vm330, %v331, %v329
          %v333 = vrsqrt.pop %v323
          %v334 = vmul.f32 %v323, %v333
          %vm335 = vcmp.eq.f32.partialorder %v323, inf
          %v336 = vsel %vm335, %v323, %v334
          %vm337 = vcmp.eq.f32.partialorder %v323, 0.0
          %v338 = vand.u32 %v323, 2147483648
          %v339 = vsel %vm337, %v338, %v336
          %v340 = vrsqrt.pop %v324
          %v341 = vmul.f32 %v324, %v340
          %vm342 = vcmp.eq.f32.partialorder %v324, inf
          %v343 = vsel %vm342, %v324, %v341
          %vm344 = vcmp.eq.f32.partialorder %v324, 0.0
          %v345 = vand.u32 %v324, 2147483648
          %v346 = vsel %vm344, %v345, %v343
          %v347 = vrsqrt.pop %v325
          %v348 = vmul.f32 %v325, %v347
          %vm349 = vcmp.eq.f32.partialorder %v325, inf
          %v350 = vsel %vm349, %v325, %v348
          %vm351 = vcmp.eq.f32.partialorder %v325, 0.0
          %v352 = vand.u32 %v325, 2147483648
          %v353 = vsel %vm351, %v352, %v350
          %vm354 = vcmask 7168
          %v355 = vsel %vm354, %v332, 0.0
          %v356 = vsel %vm354, %v339, 0.0
          %v357 = vadd.f32 %v355, %v356
          %v358 = vsel %vm354, %v346, 0.0
          %v359 = vadd.f32 %v357, %v358
          %v360 = vsel %vm354, %v353, 0.0
          %v361 = vadd.f32 %v359, %v360
          %362 = vadd.xlane.f32.xlu0 %v361
          %v363 = vpop.xlane.xlu0 %362
          %v364 = vrot.slane %v363, 4
          %v365 = vadd.f32 %v363, %v364
          %v366 = vrot.slane %v365, 2
          %v367 = vadd.f32 %v365, %v366
          %v368 = vrot.slane %v367, 1
          %v369 = vadd.f32 %v367, %v368
          %s370 = vtos %v369
          %v371 = vrcp.pop 32.0
          %s372 = vtos %v371
          %s373 = smul.f32 %s370, %s372
          %s374 = sadd.f32 %s373, 1e-06
          %v375 = vstv %s374
          %v376 = vrcp.pop %v375
          %v377 = vmul.f32 %v332, %v376
          %v378 = vmul.f32 %v339, %v376
          %v379 = vmul.f32 %v346, %v376
          %v380 = vmul.f32 %v353, %v376
          %381 = vst.msk [vmem:[#allocation2] sm:$0xff] %vm354, %v377
          %382 = vst.msk [vmem:[#allocation2 + $0x8] sm:$0xff] %vm354, %v378
          %383 = vst.msk [vmem:[#allocation2 + $0x10] sm:$0xff] %vm354, %v379
          %384 = vst.msk [vmem:[#allocation2 + $0x18] sm:$0xff] %vm354, %v380
        $region44: #{tpu_custom_call.1} parent=31 // pred_fallthru
          _
        %p385 = scmp.eq.s32.totalorder %s26, 1
        // Predicated region
        $region45: #{tpu_custom_call.1} parent=31 // pred_check
          %p386 = pneg %p385
        $region46: #{tpu_custom_call.1} parent=31 // pred_check_branch
          %388 = sbr.rel (%p386) target = $region48
        $region47: #{tpu_custom_call.1} parent=31 // pred_region
          %v389 = vld [vmem:[%s224] sm:$0xff]
          %v390 = vld [vmem:[%s224 + $0x8] sm:$0xff]
          %v391 = vld [vmem:[%s224 + $0x10] sm:$0xff]
          %v392 = vld [vmem:[%s224 + $0x18] sm:$0xff]
          %v393 = vld [vmem:[%s224 + $0x20] sm:$0xff]
          %v394 = vld [vmem:[%s224 + $0x28] sm:$0xff]
          %v395 = vld [vmem:[%s224 + $0x30] sm:$0xff]
          %v396 = vld [vmem:[%s224 + $0x38] sm:$0xff]
          %s397 = scalar_lea.vmem [#allocation2], %s278
          %v398 = vld [vmem:[%s397] sm:$0xff]
          %v399 = vld [vmem:[%s397 + $0x8] sm:$0xff]
          %v400 = vld [vmem:[%s397 + $0x10] sm:$0xff]
          %v401 = vld [vmem:[%s397 + $0x18] sm:$0xff]
          %v402 = vld [vmem:[%s265] sm:$0xff]
          %v403 = vld [vmem:[%s265 + $0x8] sm:$0xff]
          %v404 = vld [vmem:[%s265 + $0x10] sm:$0xff]
          %v405 = vld [vmem:[%s265 + $0x18] sm:$0xff]
          %407 = vset.pattern.permute.xlu0 0
          %408 = vperm.xlu0 %407, %v398
          %v409 = vpop.permute.xlu0 %408
          %412 = vset.pattern.permute.xlu0 0
          %413 = vperm.xlu0 %412, %v399
          %v414 = vpop.permute.xlu0 %413
          %417 = vset.pattern.permute.xlu0 0
          %418 = vperm.xlu0 %417, %v400
          %v419 = vpop.permute.xlu0 %418
          %422 = vset.pattern.permute.xlu0 0
          %423 = vperm.xlu0 %422, %v401
          %v424 = vpop.permute.xlu0 %423
          %v426 = vmul.f32 %v389, %v409
          %v427 = vmul.f32 %v390, %v409
          %v428 = vmul.f32 %v391, %v414
          %v429 = vmul.f32 %v392, %v414
          %v430 = vmul.f32 %v393, %v419
          %v431 = vmul.f32 %v394, %v419
          %v432 = vmul.f32 %v395, %v424
          %v433 = vmul.f32 %v396, %v424
          %435 = vset.pattern.permute.xlu0 0
          %436 = vperm.xlu0 %435, %v402
          %v437 = vpop.permute.xlu0 %436
          %440 = vset.pattern.permute.xlu0 0
          %441 = vperm.xlu0 %440, %v403
          %v442 = vpop.permute.xlu0 %441
          %445 = vset.pattern.permute.xlu0 0
          %446 = vperm.xlu0 %445, %v404
          %v447 = vpop.permute.xlu0 %446
          %450 = vset.pattern.permute.xlu0 0
          %451 = vperm.xlu0 %450, %v405
          %v452 = vpop.permute.xlu0 %451
          %v454 = vmul.f32 %v437, %v426
          %v455 = vmul.f32 %v437, %v427
          %v456 = vmul.f32 %v442, %v428
          %v457 = vmul.f32 %v442, %v429
          %v458 = vmul.f32 %v447, %v430
          %v459 = vmul.f32 %v447, %v431
          %v460 = vmul.f32 %v452, %v432
          %v461 = vmul.f32 %v452, %v433
          %v462 = vld [vmem:[%s273] sm:$0xff]
          %v463 = vld [vmem:[%s273 + $0x8] sm:$0xff]
          %v464 = vld [vmem:[%s273 + $0x10] sm:$0xff]
          %v465 = vld [vmem:[%s273 + $0x18] sm:$0xff]
          %467 = vset.pattern.permute.xlu0 0
          %468 = vperm.xlu0 %467, %v462
          %v469 = vpop.permute.xlu0 %468
          %472 = vset.pattern.permute.xlu0 0
          %473 = vperm.xlu0 %472, %v463
          %v474 = vpop.permute.xlu0 %473
          %477 = vset.pattern.permute.xlu0 0
          %478 = vperm.xlu0 %477, %v464
          %v479 = vpop.permute.xlu0 %478
          %482 = vset.pattern.permute.xlu0 0
          %483 = vperm.xlu0 %482, %v465
          %v484 = vpop.permute.xlu0 %483
          %v486 = vadd.f32 %v454, %v469
          %v487 = vadd.f32 %v455, %v469
          %v488 = vadd.f32 %v456, %v474
          %v489 = vadd.f32 %v457, %v474
          %v490 = vadd.f32 %v458, %v479
          %v491 = vadd.f32 %v459, %v479
          %v492 = vadd.f32 %v460, %v484
          %v493 = vadd.f32 %v461, %v484
          %v494 = vadd.f32 %v486, %v389
          %v495 = vadd.f32 %v487, %v390
          %v496 = vadd.f32 %v488, %v391
          %v497 = vadd.f32 %v489, %v392
          %v498 = vadd.f32 %v490, %v393
          %v499 = vadd.f32 %v491, %v394
          %v500 = vadd.f32 %v492, %v395
          %v501 = vadd.f32 %v493, %v396
          %502 = vst [vmem:[%s258] sm:$0xff] %v494
          %503 = vst [vmem:[%s258 + $0x8] sm:$0xff] %v495
          %504 = vst [vmem:[%s258 + $0x10] sm:$0xff] %v496
          %505 = vst [vmem:[%s258 + $0x18] sm:$0xff] %v497
          %506 = vst [vmem:[%s258 + $0x20] sm:$0xff] %v498
          %507 = vst [vmem:[%s258 + $0x28] sm:$0xff] %v499
          %508 = vst [vmem:[%s258 + $0x30] sm:$0xff] %v500
          %509 = vst [vmem:[%s258 + $0x38] sm:$0xff] %v501
        $region48: #{tpu_custom_call.1} parent=31 // pred_fallthru
          _
        %s510 = sand.u32 %s135, 1
        %s511 = scalar_lea.sflag [#allocation5], %s510
        %s512 = sand.u32 %s135, 1
        %s513 = smul.addr %s512, 64
        %s514 = scalar_lea.vmem [#allocation6], %s513
        // Predicated region
        $region49: #{tpu_custom_call.1} parent=31 // pred_check
          %p515 = pneg %p145
        $region50: #{tpu_custom_call.1} parent=31 // pred_check_branch
          %517 = sbr.rel (%p515) target = $region52
        $region51: #{tpu_custom_call.1} parent=31 // pred_region
          %s518 = smul.u32 %s27, %s26
          %s519 = smul.u32 4, %s518
          %s521 = ssub.s32 1024, 1024
          %522 = vsyncadd %s511, %s521
          %s523 = smul.addr %s519, 2
          %s524 = smul.addr %s25, 8
          %s525 = sadd.s32 %s523, %s524
          %s526 = smul.addr %s525, 128
          %s527 = scalar_lea.hbm %s3, %s526
          %s528 = sshll.u32 %s514, 4
          %s529 = int_to_ptr.vmem [resolvable:$true] %s528
          %534 = dma.vmem_to_hbm [thread:$0]  %s529, 1024, %s527, %s511, 256, 256, 16
        $region52: #{tpu_custom_call.1} parent=31 // pred_fallthru
          _
      $region32: #{tpu_custom_call.1} parent=5 // pred_fallthru
        _
      %p535 = scmp.le.s32.totalorder 2, %s15
      // Predicated region
      $region53: #{tpu_custom_call.1} parent=5 // pred_check
        %p536 = pneg %p535
      $region54: #{tpu_custom_call.1} parent=5 // pred_check_branch
        %538 = sbr.rel (%p536) target = $region56
      $region55: #{tpu_custom_call.1} parent=5 // pred_region
        %s539 = ssub.s32 %s15, 2
        // Predicated region
        $region57: #{tpu_custom_call.1} parent=55 // pred_check
          %p540 = pneg %p151
        $region58: #{tpu_custom_call.1} parent=55 // pred_check_branch
          %542 = sbr.rel (%p540) target = $region60
        $region59: #{tpu_custom_call.1} parent=55 // pred_region
          %s543 = sand.u32 %s136, 1
          %s544 = scalar_lea.sflag [#allocation5], %s543
          %s545 = sand.u32 %s136, 1
          %s546 = smul.addr %s545, 64
          %s547 = scalar_lea.vmem [#allocation6], %s546
          %548 = dma.done %s544, 1024
        $region60: #{tpu_custom_call.1} parent=55 // pred_fallthru
          _
      $region56: #{tpu_custom_call.1} parent=5 // pred_fallthru
        _
    $region6: #{tpu_custom_call.1} parent=1 // loop_footer
      %s19 = sadd.s32 1, %s15
    $region7: #{tpu_custom_call.1} parent=1 // loop_footer_branch
      %14 = sbr.rel target = $region3
    $region8: #{tpu_custom_call.1} parent=1 // loop_exit
      _
    %549 = vsyncpa [#allocation4], 1
    %s550 = scalar_lea.sflag [#allocation4], 1
    %551 = vsyncpa %s550, 1
    %552 = vsyncpa [#allocation5], 1
    %s553 = scalar_lea.sflag [#allocation5], 1
    %554 = vsyncpa %s553, 1

</llo_original>
